<compile_context>
chip_gen: v7x
topology: tpu7x:2x2x1
jax: 0.10.0
libtpu: 0.0.40
codegen_flags: <defaults>
</compile_context>

<pallas_src>
import functools

import jax
import jax.numpy as jnp
from jax.experimental import pallas as pl
from jax.experimental.pallas import tpu as pltpu


def _round_up(x, m):
    return ((x + m - 1) // m) * m


def _vmem_budget_bytes():
    """~75% of the device VMEM capacity; conservative 48 MiB fallback."""
    try:
        cap = int(pltpu.get_tpu_info().vmem_capacity_bytes)
    except Exception:
        cap = 64 << 20
    return max(32 << 20, (cap * 3) // 4)


def _bf16_epilogue_default():
    """bf16 VPU/EUP exists on v6e / v7x; stay in f32 on v5e and older."""
    try:
        kind = jax.devices()[0].device_kind.lower()
        return not any(t in kind for t in ("v2", "v3", "v4", "v5"))
    except Exception:
        return False


def _pick_tb(F, D, fp_itemsize, budget):
    """Largest batch tile (multiple of 128, <= 2048) whose working set fits."""
    for tb in (2048, 1024, 512, 256, 128):
        need = (
            2 * 2 * tb * F * fp_itemsize   # two fp inputs, double-buffered tiles
            + 2 * tb * F * 2               # in-kernel bf16 copies of both tiles
            + 2 * 2 * F * D * 2            # two bf16 weights (double-buffered)
            + 4 * 8 * D * 4                # biases (sublane padded)
            + 2 * 8 * tb * 4               # output blocks
            + 8 * tb * D * 4               # f32 intermediates headroom
        )
        if need <= budget:
            return tb
    return 128


def _make_kernel(epilogue_dtype):
    def filter_kernel(fp_p_ref, fp_r_ref, wp_ref, bp_ref, wr_ref, br_ref, out_ref):
        # In-register cast of the fingerprint tiles to bf16 for the MXU (cheap
        # VPU work hidden under the tile DMA); accumulation stays in f32.
        ap = fp_p_ref[...].astype(jnp.bfloat16)
        ar = fp_r_ref[...].astype(jnp.bfloat16)
        xp = jnp.dot(ap, wp_ref[...], preferred_element_type=jnp.float32) + bp_ref[...]
        xr = jnp.dot(ar, wr_ref[...], preferred_element_type=jnp.float32) + br_ref[...]
        # ELU (alpha=1) + row-wise dot (== the squeezed bmm).  Elementwise part
        # in `epilogue_dtype` (bf16 on v6e/v7x), reduction accumulated in f32.
        xp = xp.astype(epilogue_dtype)
        xr = xr.astype(epilogue_dtype)
        ep = jnp.where(xp > 0, xp, jnp.exp(xp) - 1.0)
        er = jnp.where(xr > 0, xr, jnp.exp(xr) - 1.0)
        s = jnp.sum((ep * er).astype(jnp.float32), axis=-1)   # (tb,)
        out_ref[...] = s.reshape(1, -1)                        # lane-dense (1, tb)

    return filter_kernel


@functools.partial(jax.jit, static_argnames=("tb",))
def filter_model_forward(fp_prod, fp_rxn, wp_t, bp, wr_t, br, *, tb=None):
    """fp_prod, fp_rxn: (B, fp_dim) in f32 / bf16 / int8 (cast in-kernel).
    wp_t, wr_t: (fp_dim, dim) pre-transposed weights.  bp, br: (dim,).
    Returns (B,) f32 == FilterModel(fp_prod, fp_rxn).view(-1) in eval mode."""
    B, F = fp_prod.shape
    D = wp_t.shape[1]

    budget = _vmem_budget_bytes()
    fp_itemsize = jnp.dtype(fp_prod.dtype).itemsize

    if tb is None:
        tb = _pick_tb(F, D, fp_itemsize, budget)
    else:
        tb = max(128, _round_up(int(tb), 128))
    if B > 128:
        # At least two grid steps whenever the batch allows it: lets the
        # "parallel" axis shard across v7x's two TensorCores while keeping
        # 128-lane-aligned output stores.
        tb = min(tb, _round_up(pl.cdiv(B, 2), 128))
    if tb >= B:
        tb = B                       # single block == full array dims (any B legal)
    grid = pl.cdiv(B, tb)            # ragged last block handled by Pallas

    # Weights to bf16 (tiny one-off pass, fused under jit); biases as f32 rows.
    wpt = wp_t.astype(jnp.bfloat16)
    wrt = wr_t.astype(jnp.bfloat16)
    bp2 = bp.reshape(1, D).astype(jnp.float32)
    br2 = br.reshape(1, D).astype(jnp.float32)

    epilogue_dtype = jnp.bfloat16 if _bf16_epilogue_default() else jnp.float32

    cost = pl.CostEstimate(
        flops=4 * B * F * D + 10 * B * D,
        transcendentals=2 * B * D,
        bytes_accessed=2 * B * F * fp_itemsize + 2 * F * D * 2 + 2 * D * 4 + B * 4,
    )

    out = pl.pallas_call(
        _make_kernel(epilogue_dtype),
        out_shape=jax.ShapeDtypeStruct((1, B), jnp.float32),
        grid_spec=pltpu.PrefetchScalarGridSpec(
            num_scalar_prefetch=0,
            grid=(grid,),
            in_specs=[
                pl.BlockSpec((tb, F), lambda i: (i, 0)),   # fp_prod tile
                pl.BlockSpec((tb, F), lambda i: (i, 0)),   # fp_rxn tile
                pl.BlockSpec((F, D), lambda i: (0, 0)),    # Wp^T (resident)
                pl.BlockSpec((1, D), lambda i: (0, 0)),    # bp
                pl.BlockSpec((F, D), lambda i: (0, 0)),    # Wr^T (resident)
                pl.BlockSpec((1, D), lambda i: (0, 0)),    # br
            ],
            out_specs=pl.BlockSpec((1, tb), lambda i: (0, i)),
        ),
        compiler_params=pltpu.CompilerParams(
            dimension_semantics=("parallel",),   # megacore-shardable on v7x
            vmem_limit_bytes=int(budget),
        ),
        cost_estimate=cost,
    )(fp_prod, fp_rxn, wpt, bp2, wrt, br2)

    return out.reshape(-1)


def reference_forward(fp_prod, fp_rxn, wp_t, bp, wr_t, br, *, epilogue_dtype=jnp.float32):
    # Mirrors the kernel numerics: bf16 MXU inputs, f32 accumulation, optional
    # bf16 epilogue, f32 reduction.
    xp = jnp.dot(fp_prod.astype(jnp.bfloat16), wp_t.astype(jnp.bfloat16),
                 preferred_element_type=jnp.float32) + bp
    xr = jnp.dot(fp_rxn.astype(jnp.bfloat16), wr_t.astype(jnp.bfloat16),
                 preferred_element_type=jnp.float32) + br
    xp = xp.astype(epilogue_dtype)
    xr = xr.astype(epilogue_dtype)
    ep = jnp.where(xp > 0, xp, jnp.exp(xp) - 1.0)
    er = jnp.where(xr > 0, xr, jnp.exp(xr) - 1.0)
    return jnp.sum((ep * er).astype(jnp.float32), axis=-1)


def reference_forward_f32(fp_prod, fp_rxn, wp_t, bp, wr_t, br):
    # True f32 semantics of the PyTorch module (eval mode).
    xp = fp_prod @ wp_t + bp
    xr = fp_rxn @ wr_t + br
    ep = jnp.where(xp > 0, xp, jnp.expm1(xp))
    er = jnp.where(xr > 0, xr, jnp.expm1(xr))
    return jnp.sum(ep * er, axis=-1)


if __name__ == "__main__":
    # Small shapes consistent with the module (fp_dim -> dim linear layers).
    FP_DIM, DIM = 256, 128

    key = jax.random.PRNGKey(0)
    k1, k2, k3, k4, k5, k6 = jax.random.split(key, 6)

    scale = 1.0 / jnp.sqrt(jnp.float32(FP_DIM))
    wp_t = jax.random.normal(k3, (FP_DIM, DIM), dtype=jnp.float32) * scale
    bp = jax.random.normal(k4, (DIM,), dtype=jnp.float32) * 0.01
    wr_t = jax.random.normal(k5, (FP_DIM, DIM), dtype=jnp.float32) * scale
    br = jax.random.normal(k6, (DIM,), dtype=jnp.float32) * 0.01

    epi = jnp.bfloat16 if _bf16_epilogue_default() else jnp.float32

    # Case 1: small batch -> single full-array block, no padding anywhere.
    B1 = 48
    fp_prod1 = jax.random.uniform(k1, (B1, FP_DIM), dtype=jnp.float32)
    fp_rxn1 = jax.random.uniform(k2, (B1, FP_DIM), dtype=jnp.float32)
    out1 = jax.block_until_ready(
        filter_model_forward(fp_prod1, fp_rxn1, wp_t, bp, wr_t, br))
    ref1 = reference_forward(fp_prod1, fp_rxn1, wp_t, bp, wr_t, br, epilogue_dtype=epi)
    ref1_f32 = reference_forward_f32(fp_prod1, fp_rxn1, wp_t, bp, wr_t, br)
    assert out1.shape == (B1,)
    assert jnp.allclose(out1, ref1, rtol=2e-2, atol=2e-2), (out1, ref1)
    # vs true f32 module semantics: bf16 quantization noise only.
    assert jnp.allclose(out1, ref1_f32, rtol=1e-1, atol=1e-1), (out1, ref1_f32)

    # Case 2: ragged batch (not a multiple of the tile), two grid steps with a
    # partial last block -- exercises masked boundary loads/stores (no padding).
    B2 = 200
    fp_prod2 = jax.random.uniform(k1, (B2, FP_DIM), dtype=jnp.float32)
    fp_rxn2 = jax.random.uniform(k2, (B2, FP_DIM), dtype=jnp.float32)
    out2 = jax.block_until_ready(
        filter_model_forward(fp_prod2, fp_rxn2, wp_t, bp, wr_t, br, tb=128))
    ref2 = reference_forward(fp_prod2, fp_rxn2, wp_t, bp, wr_t, br, epilogue_dtype=epi)
    ref2_f32 = reference_forward_f32(fp_prod2, fp_rxn2, wp_t, bp, wr_t, br)
    assert out2.shape == (B2,)
    assert jnp.allclose(out2, ref2, rtol=2e-2, atol=2e-2), (out2, ref2)
    assert jnp.allclose(out2, ref2_f32, rtol=1e-1, atol=1e-1), (out2, ref2_f32)

    print("KERNEL_OK")
</pallas_src>

<mosaic_0001>
module attributes {stable_mosaic.version = 11 : i64} {
  func.func @filter_kernel(%arg0: i32, %arg1: memref<48x256xf32, #tpu.memory_space<vmem>>, %arg2: memref<48x256xf32, #tpu.memory_space<vmem>>, %arg3: memref<256x128xbf16, #tpu.memory_space<vmem>>, %arg4: memref<1x128xf32, #tpu.memory_space<vmem>>, %arg5: memref<256x128xbf16, #tpu.memory_space<vmem>>, %arg6: memref<1x128xf32, #tpu.memory_space<vmem>>, %arg7: memref<1x48xf32, #tpu.memory_space<vmem>>) attributes {dimension_semantics = [#tpu.dimension_semantics<parallel>], iteration_bounds = array<i64: 1>, scalar_prefetch = 0 : i64, scratch_operands = 0 : i64, tpu.core_type = #tpu.core_type<tc>, window_params = [{transform_indices = @transform_0, window_bounds = array<i64: 48, 256>}, {transform_indices = @transform_1, window_bounds = array<i64: 48, 256>}, {pipeline_mode = #tpu.pipeline_mode<synchronous>, transform_indices = @transform_2, window_bounds = array<i64: 256, 128>}, {pipeline_mode = #tpu.pipeline_mode<synchronous>, transform_indices = @transform_3, window_bounds = array<i64: 1, 128>}, {pipeline_mode = #tpu.pipeline_mode<synchronous>, transform_indices = @transform_4, window_bounds = array<i64: 256, 128>}, {pipeline_mode = #tpu.pipeline_mode<synchronous>, transform_indices = @transform_5, window_bounds = array<i64: 1, 128>}, {transform_indices = @transform_6, window_bounds = array<i64: 1, 48>}]} {
    %c0 = arith.constant 0 : index
    %c0_0 = arith.constant 0 : index
    %0 = vector.load %arg1[%c0, %c0_0] : memref<48x256xf32, #tpu.memory_space<vmem>>, vector<48x256xf32>
    %1 = arith.truncf %0 : vector<48x256xf32> to vector<48x256xbf16>
    %c0_1 = arith.constant 0 : index
    %c0_2 = arith.constant 0 : index
    %2 = vector.load %arg2[%c0_1, %c0_2] : memref<48x256xf32, #tpu.memory_space<vmem>>, vector<48x256xf32>
    %3 = arith.truncf %2 : vector<48x256xf32> to vector<48x256xbf16>
    %c0_3 = arith.constant 0 : index
    %c0_4 = arith.constant 0 : index
    %4 = vector.load %arg3[%c0_3, %c0_4] : memref<256x128xbf16, #tpu.memory_space<vmem>>, vector<256x128xbf16>
    %cst = arith.constant dense<0.000000e+00> : vector<48x128xf32>
    %5 = tpu.matmul %1, %4, %cst {dimension_numbers = #tpu.dot_dimension_numbers<[1], [0], [0], [1], [0, 0, 1, 1], [], []>} : vector<48x256xbf16>, vector<256x128xbf16>, vector<48x128xf32> -> vector<48x128xf32>
    %c0_5 = arith.constant 0 : index
    %c0_6 = arith.constant 0 : index
    %6 = vector.load %arg4[%c0_5, %c0_6] : memref<1x128xf32, #tpu.memory_space<vmem>>, vector<1x128xf32>
    %7 = vector.broadcast %6 : vector<1x128xf32> to vector<48x128xf32>
    %8 = arith.addf %5, %7 : vector<48x128xf32>
    %c0_7 = arith.constant 0 : index
    %c0_8 = arith.constant 0 : index
    %9 = vector.load %arg5[%c0_7, %c0_8] : memref<256x128xbf16, #tpu.memory_space<vmem>>, vector<256x128xbf16>
    %cst_9 = arith.constant dense<0.000000e+00> : vector<48x128xf32>
    %10 = tpu.matmul %3, %9, %cst_9 {dimension_numbers = #tpu.dot_dimension_numbers<[1], [0], [0], [1], [0, 0, 1, 1], [], []>} : vector<48x256xbf16>, vector<256x128xbf16>, vector<48x128xf32> -> vector<48x128xf32>
    %c0_10 = arith.constant 0 : index
    %c0_11 = arith.constant 0 : index
    %11 = vector.load %arg6[%c0_10, %c0_11] : memref<1x128xf32, #tpu.memory_space<vmem>>, vector<1x128xf32>
    %12 = vector.broadcast %11 : vector<1x128xf32> to vector<48x128xf32>
    %13 = arith.addf %10, %12 : vector<48x128xf32>
    %14 = arith.truncf %8 : vector<48x128xf32> to vector<48x128xbf16>
    %15 = arith.truncf %13 : vector<48x128xf32> to vector<48x128xbf16>
    %cst_12 = arith.constant 0.000000e+00 : bf16
    %16 = vector.broadcast %cst_12 : bf16 to vector<48x128xbf16>
    %17 = arith.cmpf ogt, %14, %16 : vector<48x128xbf16>
    %18 = math.exp %14 : vector<48x128xbf16>
    %cst_13 = arith.constant 1.000000e+00 : bf16
    %19 = vector.broadcast %cst_13 : bf16 to vector<48x128xbf16>
    %20 = arith.subf %18, %19 : vector<48x128xbf16>
    %21 = arith.select %17, %14, %20 : vector<48x128xi1>, vector<48x128xbf16>
    %cst_14 = arith.constant 0.000000e+00 : bf16
    %22 = vector.broadcast %cst_14 : bf16 to vector<48x128xbf16>
    %23 = arith.cmpf ogt, %15, %22 : vector<48x128xbf16>
    %24 = math.exp %15 : vector<48x128xbf16>
    %cst_15 = arith.constant 1.000000e+00 : bf16
    %25 = vector.broadcast %cst_15 : bf16 to vector<48x128xbf16>
    %26 = arith.subf %24, %25 : vector<48x128xbf16>
    %27 = arith.select %23, %15, %26 : vector<48x128xi1>, vector<48x128xbf16>
    %28 = arith.mulf %21, %27 : vector<48x128xbf16>
    %29 = arith.extf %28 : vector<48x128xbf16> to vector<48x128xf32>
    %cst_16 = arith.constant dense<0.000000e+00> : vector<48xf32>
    %30 = vector.multi_reduction <add>, %29, %cst_16 [1] : vector<48x128xf32> to vector<48xf32>
    %31 = vector.shape_cast %30 : vector<48xf32> to vector<1x48xf32>
    %c0_17 = arith.constant 0 : index
    %c0_18 = arith.constant 0 : index
    %32 = vector.load %arg7[%c0_17, %c0_18] : memref<1x48xf32, #tpu.memory_space<vmem>>, vector<1x48xf32>
    tpu.vector_store %arg7[%c0_17, %c0_18], %31 {strides = array<i32>} : memref<1x48xf32, #tpu.memory_space<vmem>>, vector<1x48xf32>,
    return
  }
  func.func @transform_0(%arg0: i32) -> (i32, i32) {
    %c0_i32 = arith.constant 0 : i32
    %c0_i32_0 = arith.constant 0 : i32
    return %arg0, %c0_i32 : i32, i32
  }
  func.func @transform_1(%arg0: i32) -> (i32, i32) {
    %c0_i32 = arith.constant 0 : i32
    %c0_i32_0 = arith.constant 0 : i32
    return %arg0, %c0_i32 : i32, i32
  }
  func.func @transform_2(%arg0: i32) -> (i32, i32) {
    %c0_i32 = arith.constant 0 : i32
    %c0_i32_0 = arith.constant 0 : i32
    %c0_i32_1 = arith.constant 0 : i32
    return %c0_i32, %c0_i32_0 : i32, i32
  }
  func.func @transform_3(%arg0: i32) -> (i32, i32) {
    %c0_i32 = arith.constant 0 : i32
    %c0_i32_0 = arith.constant 0 : i32
    %c0_i32_1 = arith.constant 0 : i32
    return %c0_i32, %c0_i32_0 : i32, i32
  }
  func.func @transform_4(%arg0: i32) -> (i32, i32) {
    %c0_i32 = arith.constant 0 : i32
    %c0_i32_0 = arith.constant 0 : i32
    %c0_i32_1 = arith.constant 0 : i32
    return %c0_i32, %c0_i32_0 : i32, i32
  }
  func.func @transform_5(%arg0: i32) -> (i32, i32) {
    %c0_i32 = arith.constant 0 : i32
    %c0_i32_0 = arith.constant 0 : i32
    %c0_i32_1 = arith.constant 0 : i32
    return %c0_i32, %c0_i32_0 : i32, i32
  }
  func.func @transform_6(%arg0: i32) -> (i32, i32) {
    %c0_i32 = arith.constant 0 : i32
    %c0_i32_0 = arith.constant 0 : i32
    return %c0_i32, %arg0 : i32, i32
  }
}

</mosaic_0001>

<llo_original>
// kernel: filter_model_forward.1
$region0: #{filter_model_forward.1}
  #allocation0 [shape = 'u32[]', space=smem, size = 0x4, offset = 0x4, fixed_abs, tag = 'smem constant byte address 0x4 - core index']
  #allocation1 [shape = 'u32[144,128]{1,0:T(1,128)}', space=vmem, size = 0x12000, scoped, tag = 'internal scratch']
  %s0 = inlined_call_operand.vmem [shape: f32[48,256], index: 0, kind: input, shape index: {}]
  %s1 = inlined_call_operand.vmem [shape: f32[48,256], index: 1, kind: input, shape index: {}]
  %s2 = inlined_call_operand.vmem [shape: bf16[256,128], index: 2, kind: input, shape index: {}]
  %s3 = inlined_call_operand.vmem [shape: f32[1,128], index: 3, kind: input, shape index: {}]
  %s4 = inlined_call_operand.vmem [shape: bf16[256,128], index: 4, kind: input, shape index: {}]
  %s5 = inlined_call_operand.vmem [shape: f32[1,128], index: 5, kind: input, shape index: {}]
  %s6 = inlined_call_operand.hbm [shape: f32[1,48], index: 6, kind: output, shape index: {}]
  %s7 = sld [smem:[#allocation0]]
  $region34: #{filter_model_forward.1} parent=0
    _
  %s9 = ssub.s32 1, %s7
  %s10 = scalar_select 0, %s9, %s7
  $region1: #{filter_model_forward.1} parent=0
    #allocation2 [shape = 'u8[512]{0}', space=vmem, size = 0x400, scoped, tag = 'output window, operand 0, single buffered']
    #allocation3 [shape = 's32[1]{0}', space=sflag, size = 0x4, scoped, tag = 'scoped memory for filter_model_forward.1']
    %11 = vsyncpa [#allocation3], 0
    // Predicated region
    $region2: #{filter_model_forward.1} parent=1 // pred_check
      _
    $region3: #{filter_model_forward.1} parent=1 // pred_check_branch
      %13 = sbr.rel (0) target = $region5
    $region4: #{filter_model_forward.1} parent=1 // pred_region
      _
    $region5: #{filter_model_forward.1} parent=1 // pred_fallthru
      _
    // Predicated region
    $region6: #{filter_model_forward.1} parent=1 // pred_check
      _
    $region7: #{filter_model_forward.1} parent=1 // pred_check_branch
      %15 = sbr.rel (0) target = $region9
    $region8: #{filter_model_forward.1} parent=1 // pred_region
      _
    $region9: #{filter_model_forward.1} parent=1 // pred_fallthru
      _
    // Predicated region
    $region10: #{filter_model_forward.1} parent=1 // pred_check
      _
    $region11: #{filter_model_forward.1} parent=1 // pred_check_branch
      %17 = sbr.rel (0) target = $region13
    $region12: #{filter_model_forward.1} parent=1 // pred_region
      _
    $region13: #{filter_model_forward.1} parent=1 // pred_fallthru
      _
    // Predicated region
    $region14: #{filter_model_forward.1} parent=1 // pred_check
      _
    $region15: #{filter_model_forward.1} parent=1 // pred_check_branch
      %19 = sbr.rel (0) target = $region17
    $region16: #{filter_model_forward.1} parent=1 // pred_region
      _
    $region17: #{filter_model_forward.1} parent=1 // pred_fallthru
      _
    // Predicated region
    $region18: #{filter_model_forward.1} parent=1 // pred_check
      _
    $region19: #{filter_model_forward.1} parent=1 // pred_check_branch
      %21 = sbr.rel (0) target = $region21
    $region20: #{filter_model_forward.1} parent=1 // pred_region
      _
    $region21: #{filter_model_forward.1} parent=1 // pred_fallthru
      _
    // Predicated region
    $region22: #{filter_model_forward.1} parent=1 // pred_check
      _
    $region23: #{filter_model_forward.1} parent=1 // pred_check_branch
      %23 = sbr.rel (0) target = $region25
    $region24: #{filter_model_forward.1} parent=1 // pred_region
      _
    $region25: #{filter_model_forward.1} parent=1 // pred_fallthru
      _
    %v26 = vld [vmem:[%s0] sm:$0xff]
    %v27 = vld [vmem:[%s0 + $0x8] sm:$0xff]
    %v28 = vld [vmem:[%s0 + $0x10] sm:$0xff]
    %v29 = vld [vmem:[%s0 + $0x18] sm:$0xff]
    %v30 = vld [vmem:[%s0 + $0x20] sm:$0xff]
    %v31 = vld [vmem:[%s0 + $0x28] sm:$0xff]
    %v32 = vld [vmem:[%s0 + $0x30] sm:$0xff]
    %v33 = vld [vmem:[%s0 + $0x38] sm:$0xff]
    %v34 = vld [vmem:[%s0 + $0x40] sm:$0xff]
    %v35 = vld [vmem:[%s0 + $0x48] sm:$0xff]
    %v36 = vld [vmem:[%s0 + $0x50] sm:$0xff]
    %v37 = vld [vmem:[%s0 + $0x58] sm:$0xff]
    %v38 = vpack.c.bf16 %v28, %v26
    %v39 = vpack.c.bf16 %v29, %v27
    %v40 = vpack.c.bf16 %v32, %v30
    %v41 = vpack.c.bf16 %v33, %v31
    %v42 = vpack.c.bf16 %v36, %v34
    %v43 = vpack.c.bf16 %v37, %v35
    %v44 = vld [vmem:[%s1] sm:$0xff]
    %v45 = vld [vmem:[%s1 + $0x8] sm:$0xff]
    %v46 = vld [vmem:[%s1 + $0x10] sm:$0xff]
    %v47 = vld [vmem:[%s1 + $0x18] sm:$0xff]
    %v48 = vld [vmem:[%s1 + $0x20] sm:$0xff]
    %v49 = vld [vmem:[%s1 + $0x28] sm:$0xff]
    %v50 = vld [vmem:[%s1 + $0x30] sm:$0xff]
    %v51 = vld [vmem:[%s1 + $0x38] sm:$0xff]
    %v52 = vld [vmem:[%s1 + $0x40] sm:$0xff]
    %v53 = vld [vmem:[%s1 + $0x48] sm:$0xff]
    %v54 = vld [vmem:[%s1 + $0x50] sm:$0xff]
    %v55 = vld [vmem:[%s1 + $0x58] sm:$0xff]
    %v56 = vpack.c.bf16 %v46, %v44
    %v57 = vpack.c.bf16 %v47, %v45
    %v58 = vpack.c.bf16 %v50, %v48
    %v59 = vpack.c.bf16 %v51, %v49
    %v60 = vpack.c.bf16 %v54, %v52
    %v61 = vpack.c.bf16 %v55, %v53
    %v62 = vld [vmem:[%s2] sm:$0xf]
    %v63 = vld [vmem:[%s2 + $0x4] sm:$0xf]
    %v64 = vld [vmem:[%s2 + $0x8] sm:$0xf]
    %v65 = vld [vmem:[%s2 + $0xc] sm:$0xf]
    %v66 = vld [vmem:[%s2 + $0x10] sm:$0xf]
    %v67 = vld [vmem:[%s2 + $0x14] sm:$0xf]
    %v68 = vld [vmem:[%s2 + $0x18] sm:$0xf]
    %v69 = vld [vmem:[%s2 + $0x1c] sm:$0xf]
    %v70 = vld [vmem:[%s2 + $0x20] sm:$0xf]
    %v71 = vld [vmem:[%s2 + $0x24] sm:$0xf]
    %v72 = vld [vmem:[%s2 + $0x28] sm:$0xf]
    %v73 = vld [vmem:[%s2 + $0x2c] sm:$0xf]
    %v74 = vld [vmem:[%s2 + $0x30] sm:$0xf]
    %v75 = vld [vmem:[%s2 + $0x34] sm:$0xf]
    %v76 = vld [vmem:[%s2 + $0x38] sm:$0xf]
    %v77 = vld [vmem:[%s2 + $0x3c] sm:$0xf]
    %v78 = vld [vmem:[%s2 + $0x40] sm:$0xf]
    %v79 = vld [vmem:[%s2 + $0x44] sm:$0xf]
    %v80 = vld [vmem:[%s2 + $0x48] sm:$0xf]
    %v81 = vld [vmem:[%s2 + $0x4c] sm:$0xf]
    %v82 = vld [vmem:[%s2 + $0x50] sm:$0xf]
    %v83 = vld [vmem:[%s2 + $0x54] sm:$0xf]
    %v84 = vld [vmem:[%s2 + $0x58] sm:$0xf]
    %v85 = vld [vmem:[%s2 + $0x5c] sm:$0xf]
    %v86 = vld [vmem:[%s2 + $0x60] sm:$0xf]
    %v87 = vld [vmem:[%s2 + $0x64] sm:$0xf]
    %v88 = vld [vmem:[%s2 + $0x68] sm:$0xf]
    %v89 = vld [vmem:[%s2 + $0x6c] sm:$0xf]
    %v90 = vld [vmem:[%s2 + $0x70] sm:$0xf]
    %v91 = vld [vmem:[%s2 + $0x74] sm:$0xf]
    %v92 = vld [vmem:[%s2 + $0x78] sm:$0xf]
    %v93 = vld [vmem:[%s2 + $0x7c] sm:$0xf]
    %v94 = vld [vmem:[%s3] sm:$0x1]
    %v96 = vlaneseq
    %v97 = vshrl.u32 %v96, 7
    %v98 = vsub.s32 0, %v97
    %v99 = vrot.slane %v94, %v98
    %v133 = vunpack.c.l.b16 %v62
    %v134 = vunpack.c.l.b16 %v63
    %v135 = vunpack.c.l.b16 %v64
    %v136 = vunpack.c.l.b16 %v65
    %v137 = vunpack.c.l.b16 %v66
    %v138 = vunpack.c.l.b16 %v67
    %v139 = vunpack.c.l.b16 %v68
    %v140 = vunpack.c.l.b16 %v69
    %v141 = vunpack.c.l.b16 %v70
    %v142 = vunpack.c.l.b16 %v71
    %v143 = vunpack.c.l.b16 %v72
    %v144 = vunpack.c.l.b16 %v73
    %v145 = vunpack.c.l.b16 %v74
    %v146 = vunpack.c.l.b16 %v75
    %v147 = vunpack.c.l.b16 %v76
    %v148 = vunpack.c.l.b16 %v77
    %v149 = vunpack.c.l.b16 %v78
    %v150 = vunpack.c.l.b16 %v79
    %v151 = vunpack.c.l.b16 %v80
    %v152 = vunpack.c.l.b16 %v81
    %v153 = vunpack.c.l.b16 %v82
    %v154 = vunpack.c.l.b16 %v83
    %v155 = vunpack.c.l.b16 %v84
    %v156 = vunpack.c.l.b16 %v85
    %v157 = vunpack.c.l.b16 %v86
    %v158 = vunpack.c.l.b16 %v87
    %v159 = vunpack.c.l.b16 %v88
    %v160 = vunpack.c.l.b16 %v89
    %v161 = vunpack.c.l.b16 %v90
    %v162 = vunpack.c.l.b16 %v91
    %v163 = vunpack.c.l.b16 %v92
    %v164 = vunpack.c.l.b16 %v93
    %v165 = vpack.c.b16 %v134, %v133
    %v166 = vpack.c.b16 %v136, %v135
    %v167 = vpack.c.b16 %v138, %v137
    %v168 = vpack.c.b16 %v140, %v139
    %v169 = vpack.c.b16 %v142, %v141
    %v170 = vpack.c.b16 %v144, %v143
    %v171 = vpack.c.b16 %v146, %v145
    %v172 = vpack.c.b16 %v148, %v147
    %v173 = vpack.c.b16 %v150, %v149
    %v174 = vpack.c.b16 %v152, %v151
    %v175 = vpack.c.b16 %v154, %v153
    %v176 = vpack.c.b16 %v156, %v155
    %v177 = vpack.c.b16 %v158, %v157
    %v178 = vpack.c.b16 %v160, %v159
    %v179 = vpack.c.b16 %v162, %v161
    %v180 = vpack.c.b16 %v164, %v163
    %197 = vmatprep.subr.bf16.mxu0 0
    %198 = vmatpush1.bf16.msra.mxu0 %v165
    %199 = vmatprep.subr.bf16.mxu0 0
    %200 = vmatpush1.bf16.msra.mxu0 %v166
    %201 = vmatprep.subr.bf16.mxu0 0
    %202 = vmatpush1.bf16.msra.mxu0 %v167
    %203 = vmatprep.subr.bf16.mxu0 0
    %204 = vmatpush1.bf16.msra.mxu0 %v168
    %205 = vmatprep.subr.bf16.mxu0 0
    %206 = vmatpush1.bf16.msra.mxu0 %v169
    %207 = vmatprep.subr.bf16.mxu0 0
    %208 = vmatpush1.bf16.msra.mxu0 %v170
    %209 = vmatprep.subr.bf16.mxu0 0
    %210 = vmatpush1.bf16.msra.mxu0 %v171
    %211 = vmatprep.subr.bf16.mxu0 0
    %212 = vmatpush1.bf16.msra.mxu0 %v172
    %213 = vmatprep.subr.bf16.mxu0 0
    %214 = vmatpush1.bf16.msra.mxu0 %v173
    %215 = vmatprep.subr.bf16.mxu0 0
    %216 = vmatpush1.bf16.msra.mxu0 %v174
    %217 = vmatprep.subr.bf16.mxu0 0
    %218 = vmatpush1.bf16.msra.mxu0 %v175
    %219 = vmatprep.subr.bf16.mxu0 0
    %220 = vmatpush1.bf16.msra.mxu0 %v176
    %221 = vmatprep.subr.bf16.mxu0 0
    %222 = vmatpush1.bf16.msra.mxu0 %v177
    %223 = vmatprep.subr.bf16.mxu0 0
    %224 = vmatpush1.bf16.msra.mxu0 %v178
    %225 = vmatprep.subr.bf16.mxu0 0
    %226 = vmatpush1.bf16.msra.mxu0 %v179
    %227 = vmatprep.subr.bf16.mxu0 0
    %228 = vmatpush1.bf16.msra.mxu0 %v180
    %229 = vmatprep.mubr.bf16.mxu0 %v39
    %230 = vmatmul.mubr.bf16.gmra.mrb[0].mxu0 %v38
    %v231 = vpop.f32.mrb[0].mxu0
    %v232 = vadd.f32 %v99, %v231
    %v233 = vpop.f32.mrb[0].mxu0
    %v234 = vpop.f32.mrb[0].mxu0
    %v235 = vadd.f32 %v99, %v234
    %v236 = vpop.f32.mrb[0].mxu0
    %237 = vmatprep.mubr.bf16.mxu0 %v41
    %238 = vmatmul.mubr.bf16.gmra.mrb[0].mxu0 %v40
    %v239 = vpop.f32.mrb[0].mxu0
    %v240 = vadd.f32 %v99, %v239
    %v241 = vpop.f32.mrb[0].mxu0
    %v242 = vpop.f32.mrb[0].mxu0
    %v243 = vadd.f32 %v99, %v242
    %v244 = vpop.f32.mrb[0].mxu0
    %245 = vmatprep.mubr.bf16.mxu0 %v43
    %246 = vmatmul.mubr.bf16.gmra.mrb[0].mxu0 %v42
    %v247 = vpop.f32.mrb[0].mxu0
    %v248 = vadd.f32 %v99, %v247
    %v249 = vpop.f32.mrb[0].mxu0
    %v250 = vpop.f32.mrb[0].mxu0
    %v251 = vadd.f32 %v99, %v250
    %v252 = vpop.f32.mrb[0].mxu0
    %253 = vdwg.mxu0
    %v254 = vld [vmem:[%s4] sm:$0xf]
    %v255 = vld [vmem:[%s4 + $0x4] sm:$0xf]
    %v256 = vld [vmem:[%s4 + $0x8] sm:$0xf]
    %v257 = vld [vmem:[%s4 + $0xc] sm:$0xf]
    %v258 = vld [vmem:[%s4 + $0x10] sm:$0xf]
    %v259 = vld [vmem:[%s4 + $0x14] sm:$0xf]
    %v260 = vld [vmem:[%s4 + $0x18] sm:$0xf]
    %v261 = vld [vmem:[%s4 + $0x1c] sm:$0xf]
    %v262 = vld [vmem:[%s4 + $0x20] sm:$0xf]
    %v263 = vld [vmem:[%s4 + $0x24] sm:$0xf]
    %v264 = vld [vmem:[%s4 + $0x28] sm:$0xf]
    %v265 = vld [vmem:[%s4 + $0x2c] sm:$0xf]
    %v266 = vld [vmem:[%s4 + $0x30] sm:$0xf]
    %v267 = vld [vmem:[%s4 + $0x34] sm:$0xf]
    %v268 = vld [vmem:[%s4 + $0x38] sm:$0xf]
    %v269 = vld [vmem:[%s4 + $0x3c] sm:$0xf]
    %v270 = vld [vmem:[%s4 + $0x40] sm:$0xf]
    %v271 = vld [vmem:[%s4 + $0x44] sm:$0xf]
    %v272 = vld [vmem:[%s4 + $0x48] sm:$0xf]
    %v273 = vld [vmem:[%s4 + $0x4c] sm:$0xf]
    %v274 = vld [vmem:[%s4 + $0x50] sm:$0xf]
    %v275 = vld [vmem:[%s4 + $0x54] sm:$0xf]
    %v276 = vld [vmem:[%s4 + $0x58] sm:$0xf]
    %v277 = vld [vmem:[%s4 + $0x5c] sm:$0xf]
    %v278 = vld [vmem:[%s4 + $0x60] sm:$0xf]
    %v279 = vld [vmem:[%s4 + $0x64] sm:$0xf]
    %v280 = vld [vmem:[%s4 + $0x68] sm:$0xf]
    %v281 = vld [vmem:[%s4 + $0x6c] sm:$0xf]
    %v282 = vld [vmem:[%s4 + $0x70] sm:$0xf]
    %v283 = vld [vmem:[%s4 + $0x74] sm:$0xf]
    %v284 = vld [vmem:[%s4 + $0x78] sm:$0xf]
    %v285 = vld [vmem:[%s4 + $0x7c] sm:$0xf]
    %v286 = vld [vmem:[%s5] sm:$0x1]
    %v288 = vlaneseq
    %v289 = vshrl.u32 %v288, 7
    %v290 = vsub.s32 0, %v289
    %v291 = vrot.slane %v286, %v290
    %v325 = vunpack.c.l.b16 %v254
    %v326 = vunpack.c.l.b16 %v255
    %v327 = vunpack.c.l.b16 %v256
    %v328 = vunpack.c.l.b16 %v257
    %v329 = vunpack.c.l.b16 %v258
    %v330 = vunpack.c.l.b16 %v259
    %v331 = vunpack.c.l.b16 %v260
    %v332 = vunpack.c.l.b16 %v261
    %v333 = vunpack.c.l.b16 %v262
    %v334 = vunpack.c.l.b16 %v263
    %v335 = vunpack.c.l.b16 %v264
    %v336 = vunpack.c.l.b16 %v265
    %v337 = vunpack.c.l.b16 %v266
    %v338 = vunpack.c.l.b16 %v267
    %v339 = vunpack.c.l.b16 %v268
    %v340 = vunpack.c.l.b16 %v269
    %v341 = vunpack.c.l.b16 %v270
    %v342 = vunpack.c.l.b16 %v271
    %v343 = vunpack.c.l.b16 %v272
    %v344 = vunpack.c.l.b16 %v273
    %v345 = vunpack.c.l.b16 %v274
    %v346 = vunpack.c.l.b16 %v275
    %v347 = vunpack.c.l.b16 %v276
    %v348 = vunpack.c.l.b16 %v277
    %v349 = vunpack.c.l.b16 %v278
    %v350 = vunpack.c.l.b16 %v279
    %v351 = vunpack.c.l.b16 %v280
    %v352 = vunpack.c.l.b16 %v281
    %v353 = vunpack.c.l.b16 %v282
    %v354 = vunpack.c.l.b16 %v283
    %v355 = vunpack.c.l.b16 %v284
    %v356 = vunpack.c.l.b16 %v285
    %v357 = vpack.c.b16 %v326, %v325
    %v358 = vpack.c.b16 %v328, %v327
    %v359 = vpack.c.b16 %v330, %v329
    %v360 = vpack.c.b16 %v332, %v331
    %v361 = vpack.c.b16 %v334, %v333
    %v362 = vpack.c.b16 %v336, %v335
    %v363 = vpack.c.b16 %v338, %v337
    %v364 = vpack.c.b16 %v340, %v339
    %v365 = vpack.c.b16 %v342, %v341
    %v366 = vpack.c.b16 %v344, %v343
    %v367 = vpack.c.b16 %v346, %v345
    %v368 = vpack.c.b16 %v348, %v347
    %v369 = vpack.c.b16 %v350, %v349
    %v370 = vpack.c.b16 %v352, %v351
    %v371 = vpack.c.b16 %v354, %v353
    %v372 = vpack.c.b16 %v356, %v355
    %389 = vmatprep.subr.bf16.mxu0 0
    %390 = vmatpush1.bf16.msra.mxu0 %v357
    %391 = vmatprep.subr.bf16.mxu0 0
    %392 = vmatpush1.bf16.msra.mxu0 %v358
    %393 = vmatprep.subr.bf16.mxu0 0
    %394 = vmatpush1.bf16.msra.mxu0 %v359
    %395 = vmatprep.subr.bf16.mxu0 0
    %396 = vmatpush1.bf16.msra.mxu0 %v360
    %397 = vmatprep.subr.bf16.mxu0 0
    %398 = vmatpush1.bf16.msra.mxu0 %v361
    %399 = vmatprep.subr.bf16.mxu0 0
    %400 = vmatpush1.bf16.msra.mxu0 %v362
    %401 = vmatprep.subr.bf16.mxu0 0
    %402 = vmatpush1.bf16.msra.mxu0 %v363
    %403 = vmatprep.subr.bf16.mxu0 0
    %404 = vmatpush1.bf16.msra.mxu0 %v364
    %405 = vmatprep.subr.bf16.mxu0 0
    %406 = vmatpush1.bf16.msra.mxu0 %v365
    %407 = vmatprep.subr.bf16.mxu0 0
    %408 = vmatpush1.bf16.msra.mxu0 %v366
    %409 = vmatprep.subr.bf16.mxu0 0
    %410 = vmatpush1.bf16.msra.mxu0 %v367
    %411 = vmatprep.subr.bf16.mxu0 0
    %412 = vmatpush1.bf16.msra.mxu0 %v368
    %413 = vmatprep.subr.bf16.mxu0 0
    %414 = vmatpush1.bf16.msra.mxu0 %v369
    %415 = vmatprep.subr.bf16.mxu0 0
    %416 = vmatpush1.bf16.msra.mxu0 %v370
    %417 = vmatprep.subr.bf16.mxu0 0
    %418 = vmatpush1.bf16.msra.mxu0 %v371
    %419 = vmatprep.subr.bf16.mxu0 0
    %420 = vmatpush1.bf16.msra.mxu0 %v372
    %421 = vmatprep.mubr.bf16.mxu0 %v57
    %422 = vmatmul.mubr.bf16.gmra.mrb[0].mxu0 %v56
    %v423 = vpop.f32.mrb[0].mxu0
    %v424 = vadd.f32 %v291, %v423
    %v425 = vpop.f32.mrb[0].mxu0
    %v426 = vpop.f32.mrb[0].mxu0
    %v427 = vadd.f32 %v291, %v426
    %v428 = vpop.f32.mrb[0].mxu0
    %429 = vmatprep.mubr.bf16.mxu0 %v59
    %430 = vmatmul.mubr.bf16.gmra.mrb[0].mxu0 %v58
    %v431 = vpop.f32.mrb[0].mxu0
    %v432 = vadd.f32 %v291, %v431
    %v433 = vpop.f32.mrb[0].mxu0
    %v434 = vpop.f32.mrb[0].mxu0
    %v435 = vadd.f32 %v291, %v434
    %v436 = vpop.f32.mrb[0].mxu0
    %437 = vmatprep.mubr.bf16.mxu0 %v61
    %438 = vmatmul.mubr.bf16.gmra.mrb[0].mxu0 %v60
    %v439 = vpop.f32.mrb[0].mxu0
    %v440 = vadd.f32 %v291, %v439
    %v441 = vpop.f32.mrb[0].mxu0
    %v442 = vpop.f32.mrb[0].mxu0
    %v443 = vadd.f32 %v291, %v442
    %v444 = vpop.f32.mrb[0].mxu0
    %445 = vdwg.mxu0
    %v446 = vpack.c.bf16 %v235, %v232
    %v447 = vpack.c.bf16 %v243, %v240
    %v448 = vpack.c.bf16 %v251, %v248
    %v449 = vpack.c.bf16 %v427, %v424
    %v450 = vpack.c.bf16 %v435, %v432
    %v451 = vpack.c.bf16 %v443, %v440
    %vm452 = vcmp.gt.bf16.partialorder %v446, 0
    %vm453 = vcmp.gt.bf16.partialorder %v447, 0
    %vm454 = vcmp.gt.bf16.partialorder %v448, 0
    %v456 = vmul.bf16 %v446, 1069105081
    %v457 = vpow.bf16.pop %v456
    %v459 = vmul.bf16 %v447, 1069105081
    %v460 = vpow.bf16.pop %v459
    %v462 = vmul.bf16 %v448, 1069105081
    %v463 = vpow.bf16.pop %v462
    %v464 = vsub.bf16 %v457, 1065369472
    %v465 = vsub.bf16 %v460, 1065369472
    %v466 = vsub.bf16 %v463, 1065369472
    %v467 = vsel %vm452, %v446, %v464
    %v468 = vsel %vm453, %v447, %v465
    %v469 = vsel %vm454, %v448, %v466
    %vm470 = vcmp.gt.bf16.partialorder %v449, 0
    %vm471 = vcmp.gt.bf16.partialorder %v450, 0
    %vm472 = vcmp.gt.bf16.partialorder %v451, 0
    %v474 = vmul.bf16 %v449, 1069105081
    %v475 = vpow.bf16.pop %v474
    %v477 = vmul.bf16 %v450, 1069105081
    %v478 = vpow.bf16.pop %v477
    %v480 = vmul.bf16 %v451, 1069105081
    %v481 = vpow.bf16.pop %v480
    %v482 = vsub.bf16 %v475, 1065369472
    %v483 = vsub.bf16 %v478, 1065369472
    %v484 = vsub.bf16 %v481, 1065369472
    %v485 = vsel %vm470, %v449, %v482
    %v486 = vsel %vm471, %v450, %v483
    %v487 = vsel %vm472, %v451, %v484
    %v488 = vmul.bf16 %v467, %v485
    %v489 = vmul.bf16 %v468, %v486
    %v490 = vmul.bf16 %v469, %v487
    %v491 = vunpack.c.l.bf16 %v488
    %v492 = vunpack.c.h.bf16 %v488
    %v493 = vunpack.c.l.bf16 %v489
    %v494 = vunpack.c.h.bf16 %v489
    %v495 = vunpack.c.l.bf16 %v490
    %v496 = vunpack.c.h.bf16 %v490
    %497 = vadd.xlane.f32.xlu0 %v491
    %v498 = vpop.xlane.xlu0 %497
    %499 = vadd.xlane.f32.xlu0 %v492
    %v500 = vpop.xlane.xlu0 %499
    %501 = vadd.xlane.f32.xlu0 %v493
    %v502 = vpop.xlane.xlu0 %501
    %503 = vadd.xlane.f32.xlu0 %v494
    %v504 = vpop.xlane.xlu0 %503
    %505 = vadd.xlane.f32.xlu0 %v495
    %v506 = vpop.xlane.xlu0 %505
    %507 = vadd.xlane.f32.xlu0 %v496
    %v508 = vpop.xlane.xlu0 %507
    %v515 = vlaneseq
    %v516 = vand.u32 %v515, 127
    %v517 = vlaneseq
    %v518 = vshrl.u32 %v517, 7
    %v519 = vsub.s32 %v516, %v518
    %v520 = vrot.slane %v498, %v519
    %v521 = vadd.s32 %v516, 4294967288
    %v522 = vlaneseq
    %v523 = vshrl.u32 %v522, 7
    %v524 = vsub.s32 %v521, %v523
    %v525 = vrot.slane %v500, %v524
    %vm526 = vcmask 130112
    %v527 = vsel %vm526, %v525, %v520
    %v528 = vadd.s32 %v516, 4294967280
    %v529 = vlaneseq
    %v530 = vshrl.u32 %v529, 7
    %v531 = vsub.s32 %v528, %v530
    %v532 = vrot.slane %v502, %v531
    %vm533 = vcmask 195712
    %v534 = vsel %vm533, %v532, %v527
    %v535 = vadd.s32 %v516, 4294967272
    %v536 = vlaneseq
    %v537 = vshrl.u32 %v536, 7
    %v538 = vsub.s32 %v535, %v537
    %v539 = vrot.slane %v504, %v538
    %vm540 = vcmask 261312
    %v541 = vsel %vm540, %v539, %v534
    %v542 = vadd.s32 %v516, 4294967264
    %v543 = vlaneseq
    %v544 = vshrl.u32 %v543, 7
    %v545 = vsub.s32 %v542, %v544
    %v546 = vrot.slane %v506, %v545
    %vm547 = vcmask 326912
    %v548 = vsel %vm547, %v546, %v541
    %v549 = vadd.s32 %v516, 4294967256
    %v550 = vlaneseq
    %v551 = vshrl.u32 %v550, 7
    %v552 = vsub.s32 %v549, %v551
    %v553 = vrot.slane %v508, %v552
    %vm554 = vcmask 392512
    %v555 = vsel %vm554, %v553, %v548
    %vm557 = vcmask 385024
    %558 = vst.msk [vmem:[#allocation2] sm:$0x1] %vm557, %v555
    // Predicated region
    $region26: #{filter_model_forward.1} parent=1 // pred_check
      _
    $region27: #{filter_model_forward.1} parent=1 // pred_check_branch
      %560 = sbr.rel (0) target = $region29
    $region28: #{filter_model_forward.1} parent=1 // pred_region
      %s562 = ssub.s32 16, 16
      %563 = vsyncadd [#allocation3], %s562
      %s565 = sshll.u32 [#allocation2], 4
      %s566 = int_to_ptr.vmem [resolvable:$true] %s565
      %568 = dma.vmem_to_hbm [thread:$0]  %s566, 16, %s6, [#allocation3]
    $region29: #{filter_model_forward.1} parent=1 // pred_fallthru
      _
    // Predicated region
    $region30: #{filter_model_forward.1} parent=1 // pred_check
      _
    $region31: #{filter_model_forward.1} parent=1 // pred_check_branch
      %570 = sbr.rel (0) target = $region33
    $region32: #{filter_model_forward.1} parent=1 // pred_region
      %571 = dma.done [#allocation3], 16
    $region33: #{filter_model_forward.1} parent=1 // pred_fallthru
      _
    %572 = vsyncpa [#allocation3], 1

</llo_original>
